<compile_context>
chip_gen: v7x
topology: tpu7x:2x2x1
jax: 0.10.0
libtpu: 0.0.40
codegen_flags: <defaults>
</compile_context>

<pallas_src>
import jax
import jax.numpy as jnp
from jax.experimental import pallas as pl
from jax.experimental.pallas import tpu as pltpu


def _round_up(x: int, m: int) -> int:
    return ((x + m - 1) // m) * m


def _vmem_capacity_bytes() -> int:
    """Physical per-core VMEM (128 MiB v5e/v6e, 64 MiB v7x); conservative fallback."""
    try:
        return int(pltpu.get_tpu_info().vmem_capacity_bytes)
    except Exception:
        return 64 * 1024 * 1024


# ----------------------------------------------------------------------------- kernels


def _conv1x1_vpu_kernel(w_ref, x_ref, o_ref):
    """Tiny-channel path: VPU broadcast-FMA over sublane-dense tiles.

    w_ref: SMEM (C_out, C_in) float32 scalar weights
    x_ref: VMEM (bn, C_in, r_tile, 128)
    o_ref: VMEM (bn, C_out, r_tile, 128)
    """
    bn, c_in = x_ref.shape[0], x_ref.shape[1]
    c_out = o_ref.shape[1]
    for b in range(bn):                                  # static, small, unrolled
        # Load each input channel once (dense (r_tile,128) slabs), reuse for all C_out.
        xs = [x_ref[b, ci].astype(jnp.float32) for ci in range(c_in)]
        for co in range(c_out):
            acc = w_ref[co, 0] * xs[0]
            for ci in range(1, c_in):
                acc = acc + w_ref[co, ci] * xs[ci]
            o_ref[b, co] = acc.astype(o_ref.dtype)       # full-width (r_tile,128) store


def _make_mxu_kernel(precision):
    """General path: (C_out, C_in) @ (C_in, T) on the MXU, f32 accumulation."""

    def kernel(w_ref, x_ref, o_ref):
        o_ref[...] = jnp.dot(
            w_ref[...], x_ref[...],
            precision=precision,
            preferred_element_type=jnp.float32,
        ).astype(o_ref.dtype)

    return kernel


# ----------------------------------------------------------------------------- paths


def _conv1x1_vpu(x3, w_mat, N, C_in, C_out, R, dtype, nbytes, budget, vmem_limit):
    x4 = x3.reshape(N, C_in, R, 128)                     # free: split of last dim

    # Spatial rows per step: biggest that fits the double-buffered x/out blocks.
    per_row_bytes = 2 * (C_in + C_out) * 128 * nbytes    # x + out, double-buffered
    r_max = max(1, budget // per_row_bytes)
    if r_max >= R:
        r_tile = R
    else:
        r_tile = min(R, max(8, (r_max // 8) * 8))        # multiple of 8 sublanes

    # Batch images per step: amortize the ~0.35us fixed grid-step cost for small H*W.
    bn = 1
    if r_tile == R and N > 1:
        step_bytes = (C_in + C_out) * R * 128 * nbytes   # x + out per image
        bn = max(1, min(N, (1 << 20) // max(1, step_bytes)))   # ~1 MiB HBM per step
        bn = max(1, min(bn, budget // max(1, 2 * step_bytes)))

    # Keep at least 2 grid steps so both v7x TensorCores get work.
    if pl.cdiv(N, bn) * pl.cdiv(R, r_tile) < 2:
        if N >= 2:
            bn = (N + 1) // 2
        elif R > 8:
            r_tile = _round_up((R + 1) // 2, 8)

    grid = (pl.cdiv(N, bn), pl.cdiv(R, r_tile))

    out4 = pl.pallas_call(
        _conv1x1_vpu_kernel,
        out_shape=jax.ShapeDtypeStruct((N, C_out, R, 128), dtype),
        grid_spec=pltpu.PrefetchScalarGridSpec(
            num_scalar_prefetch=0,
            grid=grid,
            in_specs=[
                # Tiny weight as SMEM scalars (no VMEM / MXU involvement).
                pl.BlockSpec(memory_space=pltpu.MemorySpace.SMEM),
                pl.BlockSpec((bn, C_in, r_tile, 128), lambda b, s: (b, 0, s, 0)),
            ],
            out_specs=pl.BlockSpec((bn, C_out, r_tile, 128), lambda b, s: (b, 0, s, 0)),
        ),
        compiler_params=pltpu.CompilerParams(
            dimension_semantics=("parallel", "parallel"),
            vmem_limit_bytes=vmem_limit,
        ),
    )(w_mat.astype(jnp.float32), x4)
    return out4.reshape(N, C_out, R * 128)


def _conv1x1_mxu(x3, w_mat, N, C_in, C_out, hw128, dtype, nbytes, sub, budget, vmem_limit):
    # Cast the (tiny) weight to the activation dtype: bf16 activations then run a
    # native single-pass bf16 MXU matmul; accumulation stays f32.
    w_arg = w_mat.astype(dtype)
    precision = (jax.lax.Precision.HIGHEST if dtype == jnp.float32
                 else jax.lax.Precision.DEFAULT)
    kernel = _make_mxu_kernel(precision)

    # VMEM footprints including (8,128)-tile (sublane/lane) padding of the small dims.
    c_in_pad = _round_up(C_in, sub)
    c_out_pad = _round_up(C_out, sub)
    w_block_bytes = c_out_pad * _round_up(C_in, 128) * nbytes
    per_col_bytes = 2 * (c_in_pad + c_out_pad) * nbytes  # x + out, double-buffered

    min_bytes = w_block_bytes + per_col_bytes * 128
    if min_bytes > vmem_limit:
        # TODO(synk): add a C_in-reduction grid axis with an f32 VMEM accumulator (P3)
        # for very large channel counts instead of failing.
        raise ValueError(
            f"Conv1x1: C_in={C_in}, C_out={C_out} too large for a single VMEM block "
            f"({min_bytes} bytes needed > vmem_limit {vmem_limit} bytes)")

    def build_and_call(single_buffer_weight: bool):
        w_bufs = 1 if single_buffer_weight else 2
        avail = max(0, budget - w_bufs * w_block_bytes)
        tile_hw = min(hw128, max(128, (avail // per_col_bytes) // 128 * 128))
        # Keep at least 2 grid steps so both v7x TensorCores get work.
        if N * pl.cdiv(hw128, tile_hw) < 2 and hw128 >= 256:
            tile_hw = _round_up(hw128 // 2, 128)

        if single_buffer_weight:
            # Constant block index -> weight stays resident; a single buffer frees
            # VMEM for larger spatial tiles (matters for big C on v7x's 64 MiB VMEM).
            w_spec = pl.BlockSpec((C_out, C_in), lambda n, s: (0, 0),
                                  pipeline_mode=pl.Buffered(1))
        else:
            w_spec = pl.BlockSpec((C_out, C_in), lambda n, s: (0, 0))

        return pl.pallas_call(
            kernel,
            out_shape=jax.ShapeDtypeStruct((N, C_out, hw128), dtype),
            grid_spec=pltpu.PrefetchScalarGridSpec(
                num_scalar_prefetch=0,
                grid=(N, pl.cdiv(hw128, tile_hw)),
                in_specs=[
                    w_spec,
                    pl.BlockSpec((None, C_in, tile_hw), lambda n, s: (n, 0, s)),
                ],
                out_specs=pl.BlockSpec((None, C_out, tile_hw), lambda n, s: (n, 0, s)),
            ),
            compiler_params=pltpu.CompilerParams(
                dimension_semantics=("parallel", "parallel"),
                vmem_limit_bytes=vmem_limit,
            ),
        )(w_arg, x3)

    try:
        return build_and_call(True)
    except Exception:
        # pl.Buffered(1) (single-buffered resident weight) unsupported on this jax
        # version: fall back to the default double-buffered (still resident) weight.
        return build_and_call(False)


# ----------------------------------------------------------------------------- wrapper


def conv1x1_pallas(x_nchw: jax.Array, weight: jax.Array,
                   *, vmem_block_budget_bytes: int | None = None) -> jax.Array:
    """Eval-mode Conv1x1: Dropout(0.5) (identity) + 1x1 conv, no bias, NCHW.

    x_nchw: (N, C_in, H, W);  weight: (C_out, C_in, 1, 1)  ->  (N, C_out, H, W)
    """
    N, C_in, H, W = x_nchw.shape
    C_out = weight.shape[0]
    assert weight.shape == (C_out, C_in, 1, 1)

    dtype = x_nchw.dtype
    nbytes = jnp.dtype(dtype).itemsize
    sub = 32 // nbytes                       # sublane rows per packed tile: 8/16/32

    hw = H * W
    hw128 = _round_up(hw, 128)
    n_rows = hw128 // 128

    # Explicit per-generation VMEM budgets (don't rely on the scoped defaults).
    vmem_cap = _vmem_capacity_bytes()
    vmem_limit = int(min(vmem_cap * 3 // 4, 96 * 1024 * 1024))
    if vmem_block_budget_bytes is None:
        vmem_block_budget_bytes = int(min(vmem_cap // 5, 24 * 1024 * 1024))
    budget = int(vmem_block_budget_bytes)

    w_mat = weight.reshape(C_out, C_in)

    x3 = x_nchw.reshape(N, C_in, hw)         # free (contiguous)
    if hw128 != hw:
        # Pad only to the next 128-lane boundary (never to a full spatial tile).
        # TODO(synk): mask the tail in-kernel (scalar-prefetch hw + pltpu.store mask)
        # to avoid this extra HBM pass when H*W is not a multiple of 128.
        x3 = jnp.pad(x3, ((0, 0), (0, 0), (0, hw128 - hw)))

    if C_in <= 8 and C_out <= 8:
        out3 = _conv1x1_vpu(x3, w_mat, N, C_in, C_out, n_rows, dtype, nbytes,
                            budget, vmem_limit)
    else:
        out3 = _conv1x1_mxu(x3, w_mat, N, C_in, C_out, hw128, dtype, nbytes, sub,
                            budget, vmem_limit)

    if hw128 != hw:
        out3 = out3[:, :, :hw]
    return out3.reshape(N, C_out, H, W)      # free (contiguous)


if __name__ == "__main__":
    key = jax.random.PRNGKey(0)
    kx, kw, kx2, kw2 = jax.random.split(key, 4)

    # --- small-channel case (the module's typical use, C_out=1): VPU FMA path ---
    N, C_in, H, W = 2, 4, 16, 16
    C_out = 1
    x = jax.random.normal(kx, (N, C_in, H, W), dtype=jnp.float32)
    weight = jax.random.normal(kw, (C_out, C_in, 1, 1), dtype=jnp.float32) * 0.1

    out = jax.block_until_ready(conv1x1_pallas(x, weight))
    ref = jnp.einsum("nchw,oc->nohw", x, weight.reshape(C_out, C_in),
                     precision=jax.lax.Precision.HIGHEST)
    assert out.shape == (N, C_out, H, W)
    assert jnp.allclose(out, ref, atol=1e-5), "VPU-path mismatch vs reference"

    # --- larger-channel case: MXU GEMM path (tight tolerance, HIGHEST precision) ---
    C_in2, C_out2 = 128, 128
    x2 = jax.random.normal(kx2, (N, C_in2, H, W), dtype=jnp.float32)
    w2 = jax.random.normal(kw2, (C_out2, C_in2, 1, 1), dtype=jnp.float32) * 0.05
    out2 = jax.block_until_ready(conv1x1_pallas(x2, w2))
    ref2 = jnp.einsum("nchw,oc->nohw", x2, w2.reshape(C_out2, C_in2),
                      precision=jax.lax.Precision.HIGHEST)
    assert out2.shape == (N, C_out2, H, W)
    rel_err = jnp.max(jnp.abs(out2 - ref2)) / (jnp.max(jnp.abs(ref2)) + 1e-6)
    assert rel_err < 5e-4, f"MXU-path mismatch vs reference (rel_err={rel_err})"

    print("KERNEL_OK")
</pallas_src>

<mosaic_0001>
module attributes {stable_mosaic.version = 11 : i64} {
  func.func @_conv1x1_vpu_kernel(%arg0: i32, %arg1: i32, %arg2: memref<1x4xf32, #tpu.memory_space<smem>>, %arg3: memref<1x4x2x128xf32, #tpu.memory_space<vmem>>, %arg4: memref<1x1x2x128xf32, #tpu.memory_space<vmem>>) attributes {dimension_semantics = [#tpu.dimension_semantics<parallel>, #tpu.dimension_semantics<parallel>], iteration_bounds = array<i64: 2, 1>, scalar_prefetch = 0 : i64, scratch_operands = 0 : i64, tpu.core_type = #tpu.core_type<tc>, window_params = [{transform_indices = @transform_0, window_bounds = array<i64: 1, 4>}, {transform_indices = @transform_1, window_bounds = array<i64: 1, 4, 2, 128>}, {transform_indices = @transform_2, window_bounds = array<i64: 1, 1, 2, 128>}]} {
    %c0 = arith.constant 0 : index
    %c0_0 = arith.constant 0 : index
    %c0_1 = arith.constant 0 : index
    %c0_2 = arith.constant 0 : index
    %0 = vector.load %arg3[%c0, %c0_0, %c0_1, %c0_2] : memref<1x4x2x128xf32, #tpu.memory_space<vmem>>, vector<1x1x2x128xf32>
    %1 = vector.shape_cast %0 : vector<1x1x2x128xf32> to vector<2x128xf32>
    %c0_3 = arith.constant 0 : index
    %c1 = arith.constant 1 : index
    %c0_4 = arith.constant 0 : index
    %c0_5 = arith.constant 0 : index
    %2 = vector.load %arg3[%c0_3, %c1, %c0_4, %c0_5] : memref<1x4x2x128xf32, #tpu.memory_space<vmem>>, vector<1x1x2x128xf32>
    %3 = vector.shape_cast %2 : vector<1x1x2x128xf32> to vector<2x128xf32>
    %c0_6 = arith.constant 0 : index
    %c2 = arith.constant 2 : index
    %c0_7 = arith.constant 0 : index
    %c0_8 = arith.constant 0 : index
    %4 = vector.load %arg3[%c0_6, %c2, %c0_7, %c0_8] : memref<1x4x2x128xf32, #tpu.memory_space<vmem>>, vector<1x1x2x128xf32>
    %5 = vector.shape_cast %4 : vector<1x1x2x128xf32> to vector<2x128xf32>
    %c0_9 = arith.constant 0 : index
    %c3 = arith.constant 3 : index
    %c0_10 = arith.constant 0 : index
    %c0_11 = arith.constant 0 : index
    %6 = vector.load %arg3[%c0_9, %c3, %c0_10, %c0_11] : memref<1x4x2x128xf32, #tpu.memory_space<vmem>>, vector<1x1x2x128xf32>
    %7 = vector.shape_cast %6 : vector<1x1x2x128xf32> to vector<2x128xf32>
    %c0_12 = arith.constant 0 : index
    %c0_13 = arith.constant 0 : index
    %8 = memref.load %arg2[%c0_12, %c0_13] : memref<1x4xf32, #tpu.memory_space<smem>>
    %9 = vector.broadcast %8 : f32 to vector<2x128xf32>
    %10 = arith.mulf %9, %1 : vector<2x128xf32>
    %c0_14 = arith.constant 0 : index
    %c1_15 = arith.constant 1 : index
    %11 = memref.load %arg2[%c0_14, %c1_15] : memref<1x4xf32, #tpu.memory_space<smem>>
    %12 = vector.broadcast %11 : f32 to vector<2x128xf32>
    %13 = arith.mulf %12, %3 : vector<2x128xf32>
    %14 = arith.addf %10, %13 : vector<2x128xf32>
    %c0_16 = arith.constant 0 : index
    %c2_17 = arith.constant 2 : index
    %15 = memref.load %arg2[%c0_16, %c2_17] : memref<1x4xf32, #tpu.memory_space<smem>>
    %16 = vector.broadcast %15 : f32 to vector<2x128xf32>
    %17 = arith.mulf %16, %5 : vector<2x128xf32>
    %18 = arith.addf %14, %17 : vector<2x128xf32>
    %c0_18 = arith.constant 0 : index
    %c3_19 = arith.constant 3 : index
    %19 = memref.load %arg2[%c0_18, %c3_19] : memref<1x4xf32, #tpu.memory_space<smem>>
    %20 = vector.broadcast %19 : f32 to vector<2x128xf32>
    %21 = arith.mulf %20, %7 : vector<2x128xf32>
    %22 = arith.addf %18, %21 : vector<2x128xf32>
    %c0_20 = arith.constant 0 : index
    %c0_21 = arith.constant 0 : index
    %c0_22 = arith.constant 0 : index
    %c0_23 = arith.constant 0 : index
    %23 = vector.load %arg4[%c0_20, %c0_21, %c0_22, %c0_23] : memref<1x1x2x128xf32, #tpu.memory_space<vmem>>, vector<1x1x2x128xf32>
    %24 = vector.shape_cast %23 : vector<1x1x2x128xf32> to vector<2x128xf32>
    %25 = vector.shape_cast %22 : vector<2x128xf32> to vector<1x1x2x128xf32>
    tpu.vector_store %arg4[%c0_20, %c0_21, %c0_22, %c0_23], %25 {strides = array<i32>} : memref<1x1x2x128xf32, #tpu.memory_space<vmem>>, vector<1x1x2x128xf32>,
    return
  }
  func.func @transform_0(%arg0: i32, %arg1: i32) -> (i32, i32) {
    %c0_i32 = arith.constant 0 : i32
    %c0_i32_0 = arith.constant 0 : i32
    %c0_i32_1 = arith.constant 0 : i32
    return %c0_i32, %c0_i32_0 : i32, i32
  }
  func.func @transform_1(%arg0: i32, %arg1: i32) -> (i32, i32, i32, i32) {
    %c0_i32 = arith.constant 0 : i32
    %c0_i32_0 = arith.constant 0 : i32
    %c0_i32_1 = arith.constant 0 : i32
    return %arg0, %c0_i32, %arg1, %c0_i32_0 : i32, i32, i32, i32
  }
  func.func @transform_2(%arg0: i32, %arg1: i32) -> (i32, i32, i32, i32) {
    %c0_i32 = arith.constant 0 : i32
    %c0_i32_0 = arith.constant 0 : i32
    %c0_i32_1 = arith.constant 0 : i32
    return %arg0, %c0_i32, %arg1, %c0_i32_0 : i32, i32, i32, i32
  }
}

</mosaic_0001>

<llo_original>
// kernel: tpu_custom_call.1
$region0: #{tpu_custom_call.1}
  #allocation0 [shape = 'u32[]', space=smem, size = 0x4, offset = 0x4, fixed_abs, tag = 'smem constant byte address 0x4 - core index']
  #allocation1 [shape = 'u32[144,128]{1,0:T(1,128)}', space=vmem, size = 0x12000, scoped, tag = 'internal scratch']
  %s0 = inlined_call_operand.hbm [shape: f32[1,4], index: 0, kind: input, shape index: {}]
  %s1 = inlined_call_operand.hbm [shape: f32[2,4,2,128], index: 1, kind: input, shape index: {}]
  %s2 = inlined_call_operand.hbm [shape: f32[2,1,2,128], index: 2, kind: output, shape index: {}]
  %s3 = sld [smem:[#allocation0]]
  $region49: #{tpu_custom_call.1} parent=0
    _
  %s5 = ssub.s32 1, %s3
  %s6 = scalar_select 0, %s5, %s3
  $region1: #{tpu_custom_call.1} parent=0
    #allocation2 [shape = 'u8[512]{0}', space=smem, size = 0x200, scoped, tag = 'input window, operand 0, single buffered']
    #allocation3 [shape = 's32[2]{0}', space=sflag, size = 0x8, scoped, tag = 'scoped memory for tpu_custom_call.1']
    #allocation4 [shape = 's32[2]{0}', space=sflag, size = 0x8, scoped, tag = 'scoped memory for tpu_custom_call.1']
    #allocation5 [shape = 's32[2]{0}', space=sflag, size = 0x8, scoped, tag = 'scoped memory for tpu_custom_call.1']
    #allocation6 [shape = 'u8[8192]{0}', space=vmem, size = 0x2000, scoped, tag = 'input window, operand 1']
    #allocation7 [shape = 'u8[2048]{0}', space=vmem, size = 0x800, scoped, tag = 'output window, operand 0']
    %7 = vsyncpa [#allocation5], 0
    %8 = vsyncpa [#allocation3], 0
    %s9 = scalar_lea.sflag [#allocation3], 1
    %10 = vsyncpa %s9, 0
    %11 = vsyncpa [#allocation4], 0
    %s12 = scalar_lea.sflag [#allocation4], 1
    %13 = vsyncpa %s12, 0
    loop: start=0, step=1, limit=4
    $region2: #{tpu_custom_call.1} parent=1 // loop_pre_header
      _
    $region3: #{tpu_custom_call.1} parent=1 // loop_header
      %s15 = sphi 0, %s19
      %p16 = scmp.ge.s32.totalorder %s15, 4
      %s22 = sphi 0, %s34
      %s23 = sphi 0, %s30
      %s24 = sphi 0, %s22
      %s25 = sphi 0, %s23
      %s26 = sphi 0, %s24
      %s27 = sphi 0, %s25
      %s35 = sphi 0, %s35
      %s37 = sphi 0, %s35
      %s38 = sphi 0, %s37
      %s52 = sphi 0, %s38
      %s60 = sphi 0, %s62
      %s63 = sphi 0, %s60
      %s64 = sphi 0, %s63
      %s80 = sphi 0, %s64
      %s88 = sphi 0, %s90
      %s91 = sphi 0, %s88
      %s92 = sphi 0, %s91
      %s108 = sphi 0, %s92
    $region4: #{tpu_custom_call.1} parent=1 // loop_header_branch
      %18 = sbr.rel (%p16) target = $region8
    $region5: #{tpu_custom_call.1} parent=1 // loop_body
      %s20 = ssub.s32 %s15, 1
      %s21 = ssub.s32 %s15, 2
      %s28 = sadd.s32 1, %s23
      %p29 = scmp.ge.s32.totalorder %s28, 1
      %s30 = scalar_select %p29, 0, %s28
      %s31 = sadd.s32 1, %s22
      %s32 = scalar_select %p29, %s31, %s22
      %p33 = scmp.ge.s32.totalorder %s32, 2
      %s34 = scalar_select %p33, 0, %s32
      %s36 = sadd.s32 %s35, 1
      %p39 = scmp.eq.s32.totalorder %s15, 1
      %p40 = scmp.ne.s32.totalorder %s35, %s37
      %p41 = scmp.eq.s32.totalorder %s15, 0
      %p42 = por %p40, %p41
      %p43 = scmp.ne.s32.totalorder %s35, %s37
      %p44 = scmp.eq.s32.totalorder %s20, 1
      %p45 = por %p43, %p44
      %p46 = scmp.ne.s32.totalorder %s37, %s38
      %p47 = scmp.eq.s32.totalorder %s20, 0
      %p48 = por %p46, %p47
      %p49 = scmp.ne.s32.totalorder %s37, %s38
      %p50 = scmp.eq.s32.totalorder %s21, 1
      %p51 = por %p49, %p50
      %p53 = scmp.ne.s32.totalorder %s38, %s52
      %p54 = scmp.eq.s32.totalorder %s21, 0
      %p55 = por %p53, %p54
      %s56 = ssub.s32 %s22, %s34
      %s57 = ssub.s32 %s23, %s30
      %s58 = sor.u32 %s56, %s57
      %p59 = scmp.eq.s32.totalorder %s58, 0
      %s61 = sadd.s32 %s60, 1
      %s62 = scalar_select %p59, %s60, %s61
      %p65 = pneg %p59
      %p66 = scmp.eq.s32.totalorder %s15, 1
      %p67 = por %p65, %p66
      %p68 = scmp.ne.s32.totalorder %s60, %s63
      %p69 = scmp.eq.s32.totalorder %s15, 0
      %p70 = por %p68, %p69
      %p71 = scmp.ne.s32.totalorder %s60, %s63
      %p72 = scmp.eq.s32.totalorder %s20, 1
      %p73 = por %p71, %p72
      %p74 = scmp.ne.s32.totalorder %s63, %s64
      %p75 = scmp.eq.s32.totalorder %s20, 0
      %p76 = por %p74, %p75
      %p77 = scmp.ne.s32.totalorder %s63, %s64
      %p78 = scmp.eq.s32.totalorder %s21, 1
      %p79 = por %p77, %p78
      %p81 = scmp.ne.s32.totalorder %s64, %s80
      %p82 = scmp.eq.s32.totalorder %s21, 0
      %p83 = por %p81, %p82
      %s84 = ssub.s32 %s22, %s34
      %s85 = ssub.s32 %s23, %s30
      %s86 = sor.u32 %s84, %s85
      %p87 = scmp.eq.s32.totalorder %s86, 0
      %s89 = sadd.s32 %s88, 1
      %s90 = scalar_select %p87, %s88, %s89
      %p93 = pneg %p87
      %p94 = scmp.eq.s32.totalorder %s15, 1
      %p95 = por %p93, %p94
      %p96 = scmp.ne.s32.totalorder %s88, %s91
      %p97 = scmp.eq.s32.totalorder %s15, 0
      %p98 = por %p96, %p97
      %p99 = scmp.ne.s32.totalorder %s88, %s91
      %p100 = scmp.eq.s32.totalorder %s20, 1
      %p101 = por %p99, %p100
      %p102 = scmp.ne.s32.totalorder %s91, %s92
      %p103 = scmp.eq.s32.totalorder %s20, 0
      %p104 = por %p102, %p103
      %p105 = scmp.ne.s32.totalorder %s91, %s92
      %p106 = scmp.eq.s32.totalorder %s21, 1
      %p107 = por %p105, %p106
      %p109 = scmp.ne.s32.totalorder %s92, %s108
      %p110 = scmp.eq.s32.totalorder %s21, 0
      %p111 = por %p109, %p110
      %p112 = scmp.le.s32.totalorder 1, %s15
      %p113 = scmp.lt.s32.totalorder %s15, 3
      %p114 = pnand %p112, %p113
      %p115 = pneg %p114
      // Predicated region
      $region9: #{tpu_custom_call.1} parent=5 // pred_check
        _
      $region10: #{tpu_custom_call.1} parent=5 // pred_check_branch
        %117 = sbr.rel (%p114) target = $region12
      $region11: #{tpu_custom_call.1} parent=5 // pred_region
        %s118 = ssub.s32 %s15, 1
        // Predicated region
        $region13: #{tpu_custom_call.1} parent=11 // pred_check
          %p119 = pneg %p48
        $region14: #{tpu_custom_call.1} parent=11 // pred_check_branch
          %121 = sbr.rel (%p119) target = $region16
        $region15: #{tpu_custom_call.1} parent=11 // pred_region
          %s123 = ssub.s32 16, 16
          %124 = vsyncadd [#allocation5], %s123
          %127 = dma.hbm_to_smem %s0, 16, [#allocation2], [#allocation5]
        $region16: #{tpu_custom_call.1} parent=11 // pred_fallthru
          _
      $region12: #{tpu_custom_call.1} parent=5 // pred_fallthru
        _
      %p128 = scmp.lt.s32.totalorder %s15, 2
      // Predicated region
      $region17: #{tpu_custom_call.1} parent=5 // pred_check
        %p129 = pneg %p128
      $region18: #{tpu_custom_call.1} parent=5 // pred_check_branch
        %131 = sbr.rel (%p129) target = $region20
      $region19: #{tpu_custom_call.1} parent=5 // pred_region
        // Predicated region
        $region21: #{tpu_custom_call.1} parent=19 // pred_check
          %p132 = pneg %p70
        $region22: #{tpu_custom_call.1} parent=19 // pred_check_branch
          %134 = sbr.rel (%p132) target = $region24
        $region23: #{tpu_custom_call.1} parent=19 // pred_region
          %s135 = sand.u32 %s60, 1
          %s136 = scalar_lea.sflag [#allocation3], %s135
          %s137 = sand.u32 %s60, 1
          %s138 = smul.addr %s137, 8
          %s139 = scalar_lea.vmem [#allocation6], %s138
          %s141 = ssub.s32 128, 128
          %142 = vsyncadd %s136, %s141
          %s143 = smul.addr %s22, 4
          %s144 = sadd.s32 %s23, %s143
          %s145 = smul.addr %s144, 32
          %s146 = scalar_lea.hbm %s1, %s145
          %s147 = sshll.u32 %s139, 4
          %s148 = int_to_ptr.vmem [resolvable:$true] %s147
          %153 = dma.hbm_to_vmem [thread:$0]  %s146, 128, %s148, %s136, 32, 32, 2
        $region24: #{tpu_custom_call.1} parent=19 // pred_fallthru
          _
      $region20: #{tpu_custom_call.1} parent=5 // pred_fallthru
        _
      %p154 = scmp.le.s32.totalorder 1, %s15
      %p155 = scmp.lt.s32.totalorder %s15, 3
      %p156 = pnand %p154, %p155
      %p157 = pneg %p156
      // Predicated region
      $region25: #{tpu_custom_call.1} parent=5 // pred_check
        _
      $region26: #{tpu_custom_call.1} parent=5 // pred_check_branch
        %159 = sbr.rel (%p156) target = $region28
      $region27: #{tpu_custom_call.1} parent=5 // pred_region
        %s160 = ssub.s32 %s15, 1
        // Predicated region
        $region29: #{tpu_custom_call.1} parent=27 // pred_check
          %p161 = pneg %p48
        $region30: #{tpu_custom_call.1} parent=27 // pred_check_branch
          %163 = sbr.rel (%p161) target = $region32
        $region31: #{tpu_custom_call.1} parent=27 // pred_region
          %164 = dma.done [#allocation5], 16
        $region32: #{tpu_custom_call.1} parent=27 // pred_fallthru
          _
        %s165 = sand.u32 %s63, 1
        %s166 = scalar_lea.sflag [#allocation3], %s165
        %s167 = sand.u32 %s63, 1
        %s168 = smul.addr %s167, 8
        %s169 = scalar_lea.vmem [#allocation6], %s168
        // Predicated region
        $region33: #{tpu_custom_call.1} parent=27 // pred_check
          %p170 = pneg %p76
        $region34: #{tpu_custom_call.1} parent=27 // pred_check_branch
          %172 = sbr.rel (%p170) target = $region36
        $region35: #{tpu_custom_call.1} parent=27 // pred_region
          %173 = dma.done %s166, 128
        $region36: #{tpu_custom_call.1} parent=27 // pred_fallthru
          _
        %174 = sfence
        %p175 = pneg %p48
        %p176 = pneg %p45
        %s177 = sand.u32 %s63, 1
        %s178 = scalar_lea.sflag [#allocation3], %s177
        %s179 = sand.u32 %s63, 1
        %s180 = smul.addr %s179, 8
        %s181 = scalar_lea.vmem [#allocation6], %s180
        %p182 = pneg %p76
        %p183 = pneg %p73
        %p184 = pneg %p104
        %p185 = pneg %p101
        %s186 = sand.u32 %s91, 1
        %s187 = scalar_lea.sflag [#allocation4], %s186
        %s188 = sand.u32 %s91, 1
        %s189 = smul.addr %s188, 2
        %s190 = scalar_lea.vmem [#allocation7], %s189
        %v191 = vld [vmem:[%s169] sm:$0x3]
        %s192 = scalar_lea.vmem %s169, 2 [#allocation6]
        %v193 = vld [vmem:[%s192] sm:$0x3]
        %s194 = scalar_lea.vmem %s169, 4 [#allocation6]
        %v195 = vld [vmem:[%s194] sm:$0x3]
        %s196 = scalar_lea.vmem %s169, 6 [#allocation6]
        %v197 = vld [vmem:[%s196] sm:$0x3]
        %s198 = sld [smem:[#allocation2]]
        %v199 = vstv %s198
        %v200 = vmul.f32 %v199, %v191
        %s201 = sld [smem:[#allocation2 + $0x1]]
        %v202 = vstv %s201
        %v203 = vmul.f32 %v202, %v193
        %v204 = vadd.f32 %v200, %v203
        %s205 = sld [smem:[#allocation2 + $0x2]]
        %v206 = vstv %s205
        %v207 = vmul.f32 %v206, %v195
        %v208 = vadd.f32 %v204, %v207
        %s209 = sld [smem:[#allocation2 + $0x3]]
        %v210 = vstv %s209
        %v211 = vmul.f32 %v210, %v197
        %v212 = vadd.f32 %v208, %v211
        %213 = vst [vmem:[%s190] sm:$0x3] %v212
        %s214 = sand.u32 %s91, 1
        %s215 = scalar_lea.sflag [#allocation4], %s214
        %s216 = sand.u32 %s91, 1
        %s217 = smul.addr %s216, 2
        %s218 = scalar_lea.vmem [#allocation7], %s217
        // Predicated region
        $region37: #{tpu_custom_call.1} parent=27 // pred_check
          %p219 = pneg %p101
        $region38: #{tpu_custom_call.1} parent=27 // pred_check_branch
          %221 = sbr.rel (%p219) target = $region40
        $region39: #{tpu_custom_call.1} parent=27 // pred_region
          %s223 = ssub.s32 32, 32
          %224 = vsyncadd %s215, %s223
          %s225 = sadd.s32 %s25, %s24
          %s226 = smul.addr %s225, 32
          %s227 = scalar_lea.hbm %s2, %s226
          %s229 = sshll.u32 %s218, 4
          %s230 = int_to_ptr.vmem [resolvable:$true] %s229
          %232 = dma.vmem_to_hbm [thread:$0]  %s230, 32, %s227, %s215
        $region40: #{tpu_custom_call.1} parent=27 // pred_fallthru
          _
      $region28: #{tpu_custom_call.1} parent=5 // pred_fallthru
        _
      %p233 = scmp.le.s32.totalorder 2, %s15
      // Predicated region
      $region41: #{tpu_custom_call.1} parent=5 // pred_check
        %p234 = pneg %p233
      $region42: #{tpu_custom_call.1} parent=5 // pred_check_branch
        %236 = sbr.rel (%p234) target = $region44
      $region43: #{tpu_custom_call.1} parent=5 // pred_region
        %s237 = ssub.s32 %s15, 2
        // Predicated region
        $region45: #{tpu_custom_call.1} parent=43 // pred_check
          %p238 = pneg %p107
        $region46: #{tpu_custom_call.1} parent=43 // pred_check_branch
          %240 = sbr.rel (%p238) target = $region48
        $region47: #{tpu_custom_call.1} parent=43 // pred_region
          %s241 = sand.u32 %s92, 1
          %s242 = scalar_lea.sflag [#allocation4], %s241
          %s243 = sand.u32 %s92, 1
          %s244 = smul.addr %s243, 2
          %s245 = scalar_lea.vmem [#allocation7], %s244
          %246 = dma.done %s242, 32
        $region48: #{tpu_custom_call.1} parent=43 // pred_fallthru
          _
      $region44: #{tpu_custom_call.1} parent=5 // pred_fallthru
        _
    $region6: #{tpu_custom_call.1} parent=1 // loop_footer
      %s19 = sadd.s32 1, %s15
    $region7: #{tpu_custom_call.1} parent=1 // loop_footer_branch
      %14 = sbr.rel target = $region3
    $region8: #{tpu_custom_call.1} parent=1 // loop_exit
      _
    %247 = vsyncpa [#allocation3], 1
    %s248 = scalar_lea.sflag [#allocation3], 1
    %249 = vsyncpa %s248, 1
    %250 = vsyncpa [#allocation4], 1
    %s251 = scalar_lea.sflag [#allocation4], 1
    %252 = vsyncpa %s251, 1
    %253 = vsyncpa [#allocation5], 1
    %s254 = scalar_lea.sflag [#allocation5], 1
    %255 = vsyncpa %s254, 1

</llo_original>
